<compile_context>
chip_gen: v5e
topology: v5e:2x2
jax: 0.10.0
libtpu: 0.0.40
codegen_flags: <defaults>
</compile_context>

<pallas_src>
import functools

import jax
import jax.numpy as jnp
from jax.experimental import pallas as pl
from jax.experimental.pallas import tpu as pltpu

_LANE = 128  # pad the tiny N=3 output dim to a full lane width -> dense stores


def _vmem_capacity_bytes():
    """Per-TensorCore VMEM capacity; conservative fallback if unavailable."""
    try:
        info = pltpu.get_tpu_info()
        cap = getattr(info, "vmem_capacity_bytes", None)
        if cap:
            return int(cap)
    except Exception:
        pass
    return 64 << 20  # v7x-like conservative default


def _pick_b_tile(B, target=8):
    """Divisor of B that is layout-legal as the sublane dim of the (b, 128)
    output block (a multiple of 8, or the full extent).  Prefer tiles that
    leave >= 2 grid blocks so the 'parallel' axis can shard across v7x's two
    TensorCores (harmless on v5e/v6e)."""
    legal = [d for d in range(1, B + 1) if B % d == 0 and (d % 8 == 0 or d == B)]
    multi = [d for d in legal if d <= target and B // d >= 2]
    if multi:
        return max(multi)
    small = [d for d in legal if d <= target]
    if small:
        return max(small)
    return min(legal)


def _pick_s_tile(S, target, multiple):
    """Largest divisor of S that is <= target and either the full extent or a
    multiple of the dtype-aware sublane packing factor."""
    best = None
    for d in range(1, S + 1):
        if S % d or d > target:
            continue
        if d == S or d % multiple == 0:
            best = d
    return best if best is not None else S


def _siamese_head_kernel(p_ref, h_ref, w_ref, o_ref, p_acc, h_acc, *,
                         inv_seq_len):
    """Grid = (B tiles ['parallel'], S tiles ['arbitrary' reduction]).

    p_ref, h_ref : (b_tile, s_tile, H) encoded premise / hypothesis tile
    w_ref        : (3, H, 128)         row-blocks of the linear weight (padded)
    o_ref        : (b_tile, 128)       padded logits (cols 0..2 are real)
    p_acc, h_acc : (b_tile, H) f32     running sequence sums (VMEM scratch)
    """
    s = pl.program_id(1)

    @pl.when(s == 0)
    def _init():
        p_acc[...] = jnp.zeros_like(p_acc)
        h_acc[...] = jnp.zeros_like(h_acc)

    # Steady-state work: pure VPU/XLU sums over the sequence tile, accumulated
    # in f32 regardless of the HBM dtype (bf16 inputs upcast per-vreg).
    p_acc[...] += jnp.sum(p_ref[...], axis=1, dtype=jnp.float32)
    h_acc[...] += jnp.sum(h_ref[...], axis=1, dtype=jnp.float32)

    # Epilogue: mean, abs-diff and the (negligible, fully DMA-hidden)
    # projection, once per B tile.
    @pl.when(s == pl.num_programs(1) - 1)
    def _epilogue():
        p_mean = p_acc[...] * inv_seq_len
        h_mean = h_acc[...] * inv_seq_len
        diff = jnp.abs(p_mean - h_mean)
        # concat([p_mean, h_mean, diff]) @ W == sum of partial matmuls against
        # the corresponding row-blocks of W (identical semantics, no concat).
        out = (jnp.dot(p_mean, w_ref[0], preferred_element_type=jnp.float32)
               + jnp.dot(h_mean, w_ref[1], preferred_element_type=jnp.float32)
               + jnp.dot(diff, w_ref[2], preferred_element_type=jnp.float32))
        o_ref[...] = out.astype(o_ref.dtype)


def siamese_head(premise_enc, hyp_enc, weight, bias, *, vmem_budget_bytes=None):
    """premise_enc, hyp_enc: (B, S, H); weight: (3H, 3) input-major; bias: (3,)."""
    B, S, H = premise_enc.shape
    assert hyp_enc.shape == (B, S, H)
    assert hyp_enc.dtype == premise_enc.dtype
    assert weight.shape == (3 * H, 3)

    # Merge the three row-blocks of W into one (3, H, 128) array (single
    # BlockSpec, single resident copy) padded to a full lane width.
    w_all = jnp.stack(
        [weight[0 * H:1 * H], weight[1 * H:2 * H], weight[2 * H:3 * H]], axis=0)
    w_all = jnp.pad(w_all.astype(jnp.float32),
                    ((0, 0), (0, 0), (0, _LANE - w_all.shape[-1])))

    itemsize = jnp.dtype(premise_enc.dtype).itemsize
    cap = _vmem_capacity_bytes()

    # Generation-aware input budget: v5e/v6e have 128 MiB VMEM (large tiles,
    # fewer grid steps); v7x has 64 MiB per TC (keep resident set <= ~40 MiB).
    if vmem_budget_bytes is None:
        vmem_budget_bytes = (48 << 20) if cap >= (96 << 20) else (28 << 20)

    # Tile B (parallel axis) and S (reduction axis); keep H full (lane-dense).
    b_tile = _pick_b_tile(B)
    sub_mult = max(8, 32 // itemsize)          # 8 f32 / 16 bf16 / 32 int8
    # 2 inputs x 2 pipeline buffers x (b_tile, s_tile, H) must fit the budget.
    s_target = max(1, vmem_budget_bytes // (4 * b_tile * H * itemsize))
    s_tile = _pick_s_tile(S, s_target, sub_mult)

    grid = (B // b_tile, S // s_tile)

    # Real resident VMEM footprint; make the scoped limit explicit so v5e's
    # 16 MiB default doesn't reject the kernel and v7x doesn't over-commit.
    footprint = (2 * 2 * b_tile * s_tile * H * itemsize   # 2 inputs x 2 bufs
                 + 2 * 3 * H * _LANE * 4                  # weight blocks x 2 bufs
                 + 2 * b_tile * _LANE * 4                 # output x 2 bufs
                 + 2 * b_tile * H * 4)                    # f32 accumulators
    vmem_limit = int(min(cap, max(footprint + (2 << 20), 32 << 20)))

    cost = pl.CostEstimate(
        flops=2 * 2 * B * S * H + 2 * 3 * B * H * 3,
        transcendentals=0,
        bytes_accessed=2 * B * S * H * itemsize + w_all.size * 4 + B * _LANE * 4)

    kernel = functools.partial(_siamese_head_kernel, inv_seq_len=1.0 / S)

    out = pl.pallas_call(
        kernel,
        out_shape=jax.ShapeDtypeStruct((B, _LANE), jnp.float32),
        grid=grid,
        in_specs=[
            pl.BlockSpec((b_tile, s_tile, H), lambda b, s: (b, s, 0)),
            pl.BlockSpec((b_tile, s_tile, H), lambda b, s: (b, s, 0)),
            pl.BlockSpec((3, H, _LANE), lambda b, s: (0, 0, 0)),
        ],
        out_specs=pl.BlockSpec((b_tile, _LANE), lambda b, s: (b, 0)),
        scratch_shapes=[
            pltpu.VMEM((b_tile, H), jnp.float32),
            pltpu.VMEM((b_tile, H), jnp.float32),
        ],
        compiler_params=pltpu.CompilerParams(
            dimension_semantics=("parallel", "arbitrary"),
            vmem_limit_bytes=vmem_limit),
        cost_estimate=cost,
    )(premise_enc, hyp_enc, w_all)

    # Drop the lane padding and add the tiny bias outside the kernel (free).
    return out[:, :3] + bias


def encode_tokens(tokens, embedding_table):
    """Synthetic stand-in for language_model(tokens)[0] -> (B, S, H)."""
    return jnp.take(embedding_table, tokens, axis=0)


def reference_forward(premise_enc, hyp_enc, weight, bias):
    p_mean = premise_enc.mean(axis=1)
    h_mean = hyp_enc.mean(axis=1)
    diff = jnp.abs(p_mean - h_mean)
    cat = jnp.concatenate([p_mean, h_mean, diff], axis=1)
    return cat @ weight + bias


if __name__ == "__main__":
    B, S, H, VOCAB = 2, 8, 32, 50

    key = jax.random.PRNGKey(0)
    k_emb, k_w, k_b, k_p, k_h = jax.random.split(key, 5)

    # Deterministic synthetic parameters.
    embedding_table = jax.random.normal(k_emb, (VOCAB, H), dtype=jnp.float32) * 0.02
    bound = 1.0 / jnp.sqrt(3.0 * H)
    weight = jax.random.uniform(k_w, (3 * H, 3), minval=-bound, maxval=bound,
                                dtype=jnp.float32)
    bias = jax.random.uniform(k_b, (3,), minval=-bound, maxval=bound,
                              dtype=jnp.float32)

    # Token-id inputs (what the PyTorch forward receives).
    premise = jax.random.randint(k_p, (B, S), 0, VOCAB)
    hypothesis = jax.random.randint(k_h, (B, S), 0, VOCAB)

    # "Language model" encoding (glue, plain JAX).  bf16 hidden states halve
    # HBM traffic for the purely bandwidth-bound head kernel.
    premise_enc = encode_tokens(premise, embedding_table).astype(jnp.bfloat16)
    hyp_enc = encode_tokens(hypothesis, embedding_table).astype(jnp.bfloat16)

    # Pallas kernel: aggregation + abs-diff + concat + linear.
    logits = siamese_head(premise_enc, hyp_enc, weight, bias)
    logits = jax.block_until_ready(logits)

    ref = reference_forward(premise_enc.astype(jnp.float32),
                            hyp_enc.astype(jnp.float32), weight, bias)
    assert logits.shape == (B, 3), logits.shape
    assert jnp.allclose(logits, ref, atol=1e-4, rtol=1e-4), (logits, ref)

    print("KERNEL_OK")
</pallas_src>

<mosaic_0001>
module attributes {stable_mosaic.version = 11 : i64} {
  func.func @_siamese_head_kernel(%arg0: i32, %arg1: i32, %arg2: memref<2x8x32xbf16, #tpu.memory_space<vmem>>, %arg3: memref<2x8x32xbf16, #tpu.memory_space<vmem>>, %arg4: memref<3x32x128xf32, #tpu.memory_space<vmem>>, %arg5: memref<2x128xf32, #tpu.memory_space<vmem>>, %arg6: memref<2x32xf32, #tpu.memory_space<vmem>>, %arg7: memref<2x32xf32, #tpu.memory_space<vmem>>) attributes {dimension_semantics = [#tpu.dimension_semantics<parallel>, #tpu.dimension_semantics<arbitrary>], iteration_bounds = array<i64: 1, 1>, scalar_prefetch = 0 : i64, scratch_operands = 2 : i64, tpu.core_type = #tpu.core_type<tc>, window_params = [{transform_indices = @transform_0, window_bounds = array<i64: 2, 8, 32>}, {transform_indices = @transform_1, window_bounds = array<i64: 2, 8, 32>}, {pipeline_mode = #tpu.pipeline_mode<synchronous>, transform_indices = @transform_2, window_bounds = array<i64: 3, 32, 128>}, {transform_indices = @transform_3, window_bounds = array<i64: 2, 128>}]} {
    %c0_i32 = arith.constant 0 : i32
    %0 = arith.cmpi eq, %arg1, %c0_i32 : i32
    %1 = arith.extui %0 : i1 to i32
    %c0_i32_0 = arith.constant 0 : i32
    %2 = arith.cmpi ne, %1, %c0_i32_0 : i32
    scf.if %2 {
      %cst_17 = arith.constant 0.000000e+00 : f32
      %18 = vector.broadcast %cst_17 : f32 to vector<2x32xf32>
      %c0_18 = arith.constant 0 : index
      %c0_19 = arith.constant 0 : index
      %19 = vector.load %arg6[%c0_18, %c0_19] : memref<2x32xf32, #tpu.memory_space<vmem>>, vector<2x32xf32>
      tpu.vector_store %arg6[%c0_18, %c0_19], %18 {strides = array<i32>} : memref<2x32xf32, #tpu.memory_space<vmem>>, vector<2x32xf32>,
      %cst_20 = arith.constant 0.000000e+00 : f32
      %20 = vector.broadcast %cst_20 : f32 to vector<2x32xf32>
      %c0_21 = arith.constant 0 : index
      %c0_22 = arith.constant 0 : index
      %21 = vector.load %arg7[%c0_21, %c0_22] : memref<2x32xf32, #tpu.memory_space<vmem>>, vector<2x32xf32>
      tpu.vector_store %arg7[%c0_21, %c0_22], %20 {strides = array<i32>} : memref<2x32xf32, #tpu.memory_space<vmem>>, vector<2x32xf32>,
    } else {
    }
    %c0 = arith.constant 0 : index
    %c0_1 = arith.constant 0 : index
    %3 = vector.load %arg6[%c0, %c0_1] : memref<2x32xf32, #tpu.memory_space<vmem>>, vector<2x32xf32>
    %c0_2 = arith.constant 0 : index
    %c0_3 = arith.constant 0 : index
    %c0_4 = arith.constant 0 : index
    %4 = vector.load %arg2[%c0_2, %c0_3, %c0_4] : memref<2x8x32xbf16, #tpu.memory_space<vmem>>, vector<2x8x32xbf16>
    %5 = arith.extf %4 : vector<2x8x32xbf16> to vector<2x8x32xf32>
    %cst = arith.constant dense<0.000000e+00> : vector<2x32xf32>
    %6 = vector.multi_reduction <add>, %5, %cst [1] : vector<2x8x32xf32> to vector<2x32xf32>
    %7 = arith.addf %3, %6 : vector<2x32xf32>
    %c0_5 = arith.constant 0 : index
    %c0_6 = arith.constant 0 : index
    %8 = vector.load %arg6[%c0_5, %c0_6] : memref<2x32xf32, #tpu.memory_space<vmem>>, vector<2x32xf32>
    tpu.vector_store %arg6[%c0_5, %c0_6], %7 {strides = array<i32>} : memref<2x32xf32, #tpu.memory_space<vmem>>, vector<2x32xf32>,
    %c0_7 = arith.constant 0 : index
    %c0_8 = arith.constant 0 : index
    %9 = vector.load %arg7[%c0_7, %c0_8] : memref<2x32xf32, #tpu.memory_space<vmem>>, vector<2x32xf32>
    %c0_9 = arith.constant 0 : index
    %c0_10 = arith.constant 0 : index
    %c0_11 = arith.constant 0 : index
    %10 = vector.load %arg3[%c0_9, %c0_10, %c0_11] : memref<2x8x32xbf16, #tpu.memory_space<vmem>>, vector<2x8x32xbf16>
    %11 = arith.extf %10 : vector<2x8x32xbf16> to vector<2x8x32xf32>
    %cst_12 = arith.constant dense<0.000000e+00> : vector<2x32xf32>
    %12 = vector.multi_reduction <add>, %11, %cst_12 [1] : vector<2x8x32xf32> to vector<2x32xf32>
    %13 = arith.addf %9, %12 : vector<2x32xf32>
    %c0_13 = arith.constant 0 : index
    %c0_14 = arith.constant 0 : index
    %14 = vector.load %arg7[%c0_13, %c0_14] : memref<2x32xf32, #tpu.memory_space<vmem>>, vector<2x32xf32>
    tpu.vector_store %arg7[%c0_13, %c0_14], %13 {strides = array<i32>} : memref<2x32xf32, #tpu.memory_space<vmem>>, vector<2x32xf32>,
    %c0_i32_15 = arith.constant 0 : i32
    %15 = arith.cmpi eq, %arg1, %c0_i32_15 : i32
    %16 = arith.extui %15 : i1 to i32
    %c0_i32_16 = arith.constant 0 : i32
    %17 = arith.cmpi ne, %16, %c0_i32_16 : i32
    scf.if %17 {
      %c0_17 = arith.constant 0 : index
      %c0_18 = arith.constant 0 : index
      %18 = vector.load %arg6[%c0_17, %c0_18] : memref<2x32xf32, #tpu.memory_space<vmem>>, vector<2x32xf32>
      %cst_19 = arith.constant 1.250000e-01 : f32
      %19 = vector.broadcast %cst_19 : f32 to vector<2x32xf32>
      %20 = arith.mulf %18, %19 : vector<2x32xf32>
      %c0_20 = arith.constant 0 : index
      %c0_21 = arith.constant 0 : index
      %21 = vector.load %arg7[%c0_20, %c0_21] : memref<2x32xf32, #tpu.memory_space<vmem>>, vector<2x32xf32>
      %cst_22 = arith.constant 1.250000e-01 : f32
      %22 = vector.broadcast %cst_22 : f32 to vector<2x32xf32>
      %23 = arith.mulf %21, %22 : vector<2x32xf32>
      %24 = arith.subf %20, %23 : vector<2x32xf32>
      %25 = math.absf %24 : vector<2x32xf32>
      %c0_23 = arith.constant 0 : index
      %c0_24 = arith.constant 0 : index
      %c0_25 = arith.constant 0 : index
      %26 = vector.load %arg4[%c0_23, %c0_24, %c0_25] : memref<3x32x128xf32, #tpu.memory_space<vmem>>, vector<1x32x128xf32>
      %27 = vector.shape_cast %26 : vector<1x32x128xf32> to vector<32x128xf32>
      %cst_26 = arith.constant dense<0.000000e+00> : vector<2x128xf32>
      %28 = tpu.matmul %20, %27, %cst_26 {dimension_numbers = #tpu.dot_dimension_numbers<[1], [0], [0], [1], [0, 0, 1, 1], [], []>} : vector<2x32xf32>, vector<32x128xf32>, vector<2x128xf32> -> vector<2x128xf32>
      %c1 = arith.constant 1 : index
      %c0_27 = arith.constant 0 : index
      %c0_28 = arith.constant 0 : index
      %29 = vector.load %arg4[%c1, %c0_27, %c0_28] : memref<3x32x128xf32, #tpu.memory_space<vmem>>, vector<1x32x128xf32>
      %30 = vector.shape_cast %29 : vector<1x32x128xf32> to vector<32x128xf32>
      %cst_29 = arith.constant dense<0.000000e+00> : vector<2x128xf32>
      %31 = tpu.matmul %23, %30, %cst_29 {dimension_numbers = #tpu.dot_dimension_numbers<[1], [0], [0], [1], [0, 0, 1, 1], [], []>} : vector<2x32xf32>, vector<32x128xf32>, vector<2x128xf32> -> vector<2x128xf32>
      %32 = arith.addf %28, %31 : vector<2x128xf32>
      %c2 = arith.constant 2 : index
      %c0_30 = arith.constant 0 : index
      %c0_31 = arith.constant 0 : index
      %33 = vector.load %arg4[%c2, %c0_30, %c0_31] : memref<3x32x128xf32, #tpu.memory_space<vmem>>, vector<1x32x128xf32>
      %34 = vector.shape_cast %33 : vector<1x32x128xf32> to vector<32x128xf32>
      %cst_32 = arith.constant dense<0.000000e+00> : vector<2x128xf32>
      %35 = tpu.matmul %25, %34, %cst_32 {dimension_numbers = #tpu.dot_dimension_numbers<[1], [0], [0], [1], [0, 0, 1, 1], [], []>} : vector<2x32xf32>, vector<32x128xf32>, vector<2x128xf32> -> vector<2x128xf32>
      %36 = arith.addf %32, %35 : vector<2x128xf32>
      %c0_33 = arith.constant 0 : index
      %c0_34 = arith.constant 0 : index
      %37 = vector.load %arg5[%c0_33, %c0_34] : memref<2x128xf32, #tpu.memory_space<vmem>>, vector<2x128xf32>
      tpu.vector_store %arg5[%c0_33, %c0_34], %36 {strides = array<i32>} : memref<2x128xf32, #tpu.memory_space<vmem>>, vector<2x128xf32>,
    } else {
    }
    return
  }
  func.func @transform_0(%arg0: i32, %arg1: i32) -> (i32, i32, i32) {
    %c0_i32 = arith.constant 0 : i32
    %c0_i32_0 = arith.constant 0 : i32
    return %arg0, %arg1, %c0_i32 : i32, i32, i32
  }
  func.func @transform_1(%arg0: i32, %arg1: i32) -> (i32, i32, i32) {
    %c0_i32 = arith.constant 0 : i32
    %c0_i32_0 = arith.constant 0 : i32
    return %arg0, %arg1, %c0_i32 : i32, i32, i32
  }
  func.func @transform_2(%arg0: i32, %arg1: i32) -> (i32, i32, i32) {
    %c0_i32 = arith.constant 0 : i32
    %c0_i32_0 = arith.constant 0 : i32
    %c0_i32_1 = arith.constant 0 : i32
    %c0_i32_2 = arith.constant 0 : i32
    return %c0_i32, %c0_i32_0, %c0_i32_1 : i32, i32, i32
  }
  func.func @transform_3(%arg0: i32, %arg1: i32) -> (i32, i32) {
    %c0_i32 = arith.constant 0 : i32
    %c0_i32_0 = arith.constant 0 : i32
    return %arg0, %c0_i32 : i32, i32
  }
}

</mosaic_0001>

<llo_original>
// kernel: tpu_custom_call.1
$region0: #{tpu_custom_call.1}
  #allocation0 [shape = 'u32[]', space=smem, size = 0x4, offset = 0x4, fixed_abs, tag = 'smem constant byte address 0x4 - core index']
  #allocation1 [shape = 'u32[72,128]{1,0:T(1,128)}', space=vmem, size = 0x9000, scoped, tag = 'internal scratch']
  #allocation2 [shape = 'f32[2,32]{1,0:T(2,128)}', space=vmem, size = 0x400, scoped, tag = 'scratch operand']
  #allocation3 [shape = 'f32[2,32]{1,0:T(2,128)}', space=vmem, size = 0x400, scoped, tag = 'scratch operand']
  %s0 = inlined_call_operand.hbm [shape: bf16[2,8,32], index: 0, kind: input, shape index: {}]
  %s1 = inlined_call_operand.hbm [shape: bf16[2,8,32], index: 1, kind: input, shape index: {}]
  %s2 = inlined_call_operand.hbm [shape: f32[3,32,128], index: 2, kind: input, shape index: {}]
  %s3 = inlined_call_operand.hbm [shape: f32[2,128], index: 3, kind: output, shape index: {}]
  %s4 = sld [smem:[#allocation0]]
  $region42: #{tpu_custom_call.1} parent=0
    _
  %s6 = ssub.s32 1, %s4
  %s7 = scalar_select 0, %s6, %s4
  $region1: #{tpu_custom_call.1} parent=0
    #allocation4 [shape = 'u8[4096]{0}', space=vmem, size = 0x1000, scoped, tag = 'input window, operand 0, single buffered']
    #allocation5 [shape = 's32[1]{0}', space=sflag, size = 0x4, scoped, tag = 'scoped memory for tpu_custom_call.1']
    #allocation6 [shape = 's32[1]{0}', space=sflag, size = 0x4, scoped, tag = 'scoped memory for tpu_custom_call.1']
    #allocation7 [shape = 'u8[4096]{0}', space=vmem, size = 0x1000, scoped, tag = 'input window, operand 1, single buffered']
    #allocation8 [shape = 's32[1]{0}', space=sflag, size = 0x4, scoped, tag = 'scoped memory for tpu_custom_call.1']
    #allocation9 [shape = 'u8[49152]{0}', space=vmem, size = 0xc000, scoped, tag = 'input window, operand 2, single buffered']
    #allocation10 [shape = 'u8[1024]{0}', space=vmem, size = 0x400, scoped, tag = 'output window, operand 0, single buffered']
    %8 = vsyncpa [#allocation5], 0
    %9 = vsyncpa [#allocation8], 0
    %10 = vsyncpa [#allocation6], 0
    // Predicated region
    $region2: #{tpu_custom_call.1} parent=1 // pred_check
      _
    $region3: #{tpu_custom_call.1} parent=1 // pred_check_branch
      %12 = sbr.rel (0) target = $region5
    $region4: #{tpu_custom_call.1} parent=1 // pred_region
      %14 = vsyncadd [#allocation5], 0
      %s15 = sshll.u32 %s0, 4
      %s16 = int_to_ptr.hbm [resolvable:$true] %s15
      %s17 = sshll.u32 [#allocation4], 4
      %s18 = int_to_ptr.vmem [resolvable:$true] %s17
      %23 = dma.hbm_to_vmem [thread:$0]  %s16, 128, %s18, [#allocation5], 64, 64, 4
    $region5: #{tpu_custom_call.1} parent=1 // pred_fallthru
      _
    // Predicated region
    $region6: #{tpu_custom_call.1} parent=1 // pred_check
      _
    $region7: #{tpu_custom_call.1} parent=1 // pred_check_branch
      %25 = sbr.rel (0) target = $region9
    $region8: #{tpu_custom_call.1} parent=1 // pred_region
      %27 = vsyncadd [#allocation8], 0
      %s28 = sshll.u32 %s1, 4
      %s29 = int_to_ptr.hbm [resolvable:$true] %s28
      %s30 = sshll.u32 [#allocation7], 4
      %s31 = int_to_ptr.vmem [resolvable:$true] %s30
      %36 = dma.hbm_to_vmem [thread:$0]  %s29, 128, %s31, [#allocation8], 64, 64, 4
    $region9: #{tpu_custom_call.1} parent=1 // pred_fallthru
      _
    // Predicated region
    $region10: #{tpu_custom_call.1} parent=1 // pred_check
      _
    $region11: #{tpu_custom_call.1} parent=1 // pred_check_branch
      %38 = sbr.rel (0) target = $region13
    $region12: #{tpu_custom_call.1} parent=1 // pred_region
      %40 = vsyncadd [#allocation8], 0
      %s41 = sshll.u32 %s2, 4
      %s42 = int_to_ptr.hbm [resolvable:$true] %s41
      %s43 = sshll.u32 [#allocation9], 4
      %s44 = int_to_ptr.vmem [resolvable:$true] %s43
      %49 = dma.hbm_to_vmem [thread:$0]  %s42, 1536, %s44, [#allocation8], 128, 128, 8
    $region13: #{tpu_custom_call.1} parent=1 // pred_fallthru
      _
    // Predicated region
    $region14: #{tpu_custom_call.1} parent=1 // pred_check
      _
    $region15: #{tpu_custom_call.1} parent=1 // pred_check_branch
      %51 = sbr.rel (0) target = $region17
    $region16: #{tpu_custom_call.1} parent=1 // pred_region
      %53 = dma.done [#allocation5], 128
    $region17: #{tpu_custom_call.1} parent=1 // pred_fallthru
      _
    // Predicated region
    $region18: #{tpu_custom_call.1} parent=1 // pred_check
      _
    $region19: #{tpu_custom_call.1} parent=1 // pred_check_branch
      %55 = sbr.rel (0) target = $region21
    $region20: #{tpu_custom_call.1} parent=1 // pred_region
      %57 = dma.done [#allocation8], 128
    $region21: #{tpu_custom_call.1} parent=1 // pred_fallthru
      _
    // Predicated region
    $region22: #{tpu_custom_call.1} parent=1 // pred_check
      _
    $region23: #{tpu_custom_call.1} parent=1 // pred_check_branch
      %59 = sbr.rel (0) target = $region25
    $region24: #{tpu_custom_call.1} parent=1 // pred_region
      %61 = dma.done [#allocation8], 1536
    $region25: #{tpu_custom_call.1} parent=1 // pred_fallthru
      _
    %p62 = scmp.eq.s32.totalorder 0, 0
    // Predicated region
    $region26: #{tpu_custom_call.1} parent=1 // pred_check
      %p63 = pneg %p62
    $region27: #{tpu_custom_call.1} parent=1 // pred_check_branch
      %65 = sbr.rel (%p63) target = $region29
    $region28: #{tpu_custom_call.1} parent=1 // pred_region
      %vm66 = vcmask 254976
      %67 = vst.msk [vmem:[#allocation2] sm:$0x3] %vm66, 0.0
      %68 = vst.msk [vmem:[#allocation3] sm:$0x3] %vm66, 0.0
    $region29: #{tpu_custom_call.1} parent=1 // pred_fallthru
      _
    %v69 = vld [vmem:[#allocation2] sm:$0x3]
    %v70 = vld [vmem:[#allocation4] sm:$0xf]
    %v71 = vld [vmem:[#allocation4 + $0x4] sm:$0xf]
    %v72 = vunpack.c.l.bf16 %v70
    %v73 = vunpack.c.l.bf16 %v71
    %vm74 = vcmask 261120
    %v75 = vsel %vm74, %v72, 0.0
    %v76 = vrot.slane %v75, 4
    %v77 = vadd.f32 %v75, %v76
    %v78 = vrot.slane %v77, 2
    %v79 = vadd.f32 %v77, %v78
    %v80 = vrot.slane %v79, 1
    %v81 = vadd.f32 %v79, %v80
    %v82 = vsel %vm74, %v73, 0.0
    %v83 = vrot.slane %v82, 4
    %v84 = vadd.f32 %v82, %v83
    %v85 = vrot.slane %v84, 2
    %v86 = vadd.f32 %v84, %v85
    %v87 = vrot.slane %v86, 1
    %v88 = vadd.f32 %v86, %v87
    %vm91 = vcmask 1041409
    %v92 = vsel %vm91, %v88, %v81
    %v94 = vadd.f32 %v69, %v92
    %vm95 = vcmask 254976
    %96 = vst.msk [vmem:[#allocation2] sm:$0x3] %vm95, %v94
    %v97 = vld [vmem:[#allocation3] sm:$0x3]
    %v98 = vld [vmem:[#allocation7] sm:$0xf]
    %v99 = vld [vmem:[#allocation7 + $0x4] sm:$0xf]
    %v100 = vunpack.c.l.bf16 %v98
    %v101 = vunpack.c.l.bf16 %v99
    %v102 = vsel %vm74, %v100, 0.0
    %v103 = vrot.slane %v102, 4
    %v104 = vadd.f32 %v102, %v103
    %v105 = vrot.slane %v104, 2
    %v106 = vadd.f32 %v104, %v105
    %v107 = vrot.slane %v106, 1
    %v108 = vadd.f32 %v106, %v107
    %v109 = vsel %vm74, %v101, 0.0
    %v110 = vrot.slane %v109, 4
    %v111 = vadd.f32 %v109, %v110
    %v112 = vrot.slane %v111, 2
    %v113 = vadd.f32 %v111, %v112
    %v114 = vrot.slane %v113, 1
    %v115 = vadd.f32 %v113, %v114
    %v118 = vsel %vm91, %v115, %v108
    %v120 = vadd.f32 %v97, %v118
    %121 = vst.msk [vmem:[#allocation3] sm:$0x3] %vm95, %v120
    // Predicated region
    $region30: #{tpu_custom_call.1} parent=1 // pred_check
      %p122 = pneg %p62
    $region31: #{tpu_custom_call.1} parent=1 // pred_check_branch
      %124 = sbr.rel (%p122) target = $region33
    $region32: #{tpu_custom_call.1} parent=1 // pred_region
      %v125 = vld [vmem:[#allocation2] sm:$0x3]
      %v126 = vmul.f32 %v125, 0.125
      %v127 = vld [vmem:[#allocation3] sm:$0x3]
      %v128 = vmul.f32 %v127, 0.125
      %v129 = vsub.f32 %v126, %v128
      %v130 = vand.u32 2147483647, %v129
      %v131 = vld [vmem:[#allocation9] sm:$0xff]
      %v132 = vld [vmem:[#allocation9 + $0x8] sm:$0xff]
      %v133 = vld [vmem:[#allocation9 + $0x10] sm:$0xff]
      %v134 = vld [vmem:[#allocation9 + $0x18] sm:$0xff]
      %s135 = scalar_lea.vmem [#allocation9], 32
      %v136 = vld [vmem:[%s135] sm:$0xff]
      %v137 = vld [vmem:[%s135 + $0x8] sm:$0xff]
      %v138 = vld [vmem:[%s135 + $0x10] sm:$0xff]
      %v139 = vld [vmem:[%s135 + $0x18] sm:$0xff]
      %v141 = vsel %vm74, %v128, 0
      %143 = vmatpush.msra.mxu0 0.0
      %144 = vmatpush.msra.mxu0 0.0
      %145 = vmatpush.msra.mxu0 0.0
      %146 = vmatpush.msra.mxu0 0.0
      %147 = vmatpush.msra.mxu0 0.0
      %148 = vmatpush.msra.mxu0 0.0
      %149 = vmatpush.msra.mxu0 0.0
      %150 = vmatpush.msra.mxu0 0.0
      %151 = vmatpush.msra.mxu0 0.0
      %152 = vmatpush.msra.mxu0 0.0
      %153 = vmatpush.msra.mxu0 0.0
      %154 = vmatpush.msra.mxu0 0.0
      %155 = vmatpush.msra.mxu0 %v139
      %156 = vmatpush.msra.mxu0 %v138
      %157 = vmatpush.msra.mxu0 %v137
      %158 = vmatpush.msra.mxu0 %v136
      %159 = vmatmul.f32.gmra.mxu0 %v141
      %v160 = vpop.f32.mrf.mxu0
      %v161 = vadd.f32 0.0, %v160
      %162 = vdwg.mxu0
      %v164 = vsel %vm74, %v126, 0
      %166 = vmatpush.msra.mxu0 0.0
      %167 = vmatpush.msra.mxu0 0.0
      %168 = vmatpush.msra.mxu0 0.0
      %169 = vmatpush.msra.mxu0 0.0
      %170 = vmatpush.msra.mxu0 0.0
      %171 = vmatpush.msra.mxu0 0.0
      %172 = vmatpush.msra.mxu0 0.0
      %173 = vmatpush.msra.mxu0 0.0
      %174 = vmatpush.msra.mxu0 0.0
      %175 = vmatpush.msra.mxu0 0.0
      %176 = vmatpush.msra.mxu0 0.0
      %177 = vmatpush.msra.mxu0 0.0
      %178 = vmatpush.msra.mxu0 %v134
      %179 = vmatpush.msra.mxu0 %v133
      %180 = vmatpush.msra.mxu0 %v132
      %181 = vmatpush.msra.mxu0 %v131
      %182 = vmatmul.f32.gmra.mxu0 %v164
      %v183 = vpop.f32.mrf.mxu0
      %v184 = vadd.f32 %v161, %v183
      %185 = vdwg.mxu0
      %s186 = scalar_lea.vmem [#allocation9], 64
      %v187 = vld [vmem:[%s186] sm:$0xff]
      %v188 = vld [vmem:[%s186 + $0x8] sm:$0xff]
      %v189 = vld [vmem:[%s186 + $0x10] sm:$0xff]
      %v190 = vld [vmem:[%s186 + $0x18] sm:$0xff]
      %v192 = vsel %vm74, %v130, 0
      %194 = vmatpush.msra.mxu0 0.0
      %195 = vmatpush.msra.mxu0 0.0
      %196 = vmatpush.msra.mxu0 0.0
      %197 = vmatpush.msra.mxu0 0.0
      %198 = vmatpush.msra.mxu0 0.0
      %199 = vmatpush.msra.mxu0 0.0
      %200 = vmatpush.msra.mxu0 0.0
      %201 = vmatpush.msra.mxu0 0.0
      %202 = vmatpush.msra.mxu0 0.0
      %203 = vmatpush.msra.mxu0 0.0
      %204 = vmatpush.msra.mxu0 0.0
      %205 = vmatpush.msra.mxu0 0.0
      %206 = vmatpush.msra.mxu0 %v190
      %207 = vmatpush.msra.mxu0 %v189
      %208 = vmatpush.msra.mxu0 %v188
      %209 = vmatpush.msra.mxu0 %v187
      %210 = vmatmul.f32.gmra.mxu0 %v192
      %v211 = vpop.f32.mrf.mxu0
      %v212 = vadd.f32 0.0, %v211
      %213 = vdwg.mxu0
      %v214 = vadd.f32 %v184, %v212
      %215 = vst [vmem:[#allocation10] sm:$0x3] %v214
    $region33: #{tpu_custom_call.1} parent=1 // pred_fallthru
      _
    // Predicated region
    $region34: #{tpu_custom_call.1} parent=1 // pred_check
      _
    $region35: #{tpu_custom_call.1} parent=1 // pred_check_branch
      %217 = sbr.rel (0) target = $region37
    $region36: #{tpu_custom_call.1} parent=1 // pred_region
      %219 = vsyncadd [#allocation6], 0
      %s221 = sshll.u32 [#allocation10], 4
      %s222 = int_to_ptr.vmem [resolvable:$true] %s221
      %s223 = sshll.u32 %s3, 4
      %s224 = int_to_ptr.hbm [resolvable:$true] %s223
      %226 = dma.vmem_to_hbm [thread:$0]  %s222, 32, %s224, [#allocation6]
    $region37: #{tpu_custom_call.1} parent=1 // pred_fallthru
      _
    // Predicated region
    $region38: #{tpu_custom_call.1} parent=1 // pred_check
      _
    $region39: #{tpu_custom_call.1} parent=1 // pred_check_branch
      %228 = sbr.rel (0) target = $region41
    $region40: #{tpu_custom_call.1} parent=1 // pred_region
      %230 = dma.done [#allocation6], 32
    $region41: #{tpu_custom_call.1} parent=1 // pred_fallthru
      _
    %231 = vsyncpa [#allocation5], 1
    %232 = vsyncpa [#allocation8], 1
    %233 = vsyncpa [#allocation6], 1

</llo_original>
